<compile_context>
chip_gen: v7x
topology: tpu7x:2x2x1
jax: 0.10.0
libtpu: 0.0.40
codegen_flags: <defaults>
</compile_context>

<pallas_src>
import functools

import jax
import jax.numpy as jnp
from jax import lax
from jax.experimental import pallas as pl
from jax.experimental.pallas import tpu as pltpu


# ---------------------------------------------------------------------------
# Phase 1 (parallel): hoisted input projection  pre_u = u @ Wu^T + b
# ---------------------------------------------------------------------------
def _input_proj_kernel(u_ref, wu_ref, b_ref, out_ref):
    out_ref[...] = (jnp.dot(u_ref[...], wu_ref[...],
                            preferred_element_type=jnp.float32)
                    + b_ref[...]).astype(out_ref.dtype)


def _pick_tile(m, cands=(512, 256, 128, 64, 32, 16, 8)):
    for c in cands:
        if m % c == 0:
            return c
    return m


def input_projection(u_flat, wu_t, b2d):
    """(M, I) @ (I, H) + b -> (M, H), one big GEMM tiled over M."""
    M, I = u_flat.shape
    H = wu_t.shape[1]
    tm = _pick_tile(M)
    return pl.pallas_call(
        _input_proj_kernel,
        out_shape=jax.ShapeDtypeStruct((M, H), jnp.float32),
        grid_spec=pltpu.PrefetchScalarGridSpec(
            num_scalar_prefetch=0,
            grid=(M // tm,),
            in_specs=[
                pl.BlockSpec((tm, I), lambda i: (i, 0)),   # u tile (streamed)
                pl.BlockSpec((I, H), lambda i: (0, 0)),    # Wu^T   (resident)
                pl.BlockSpec((1, H), lambda i: (0, 0)),    # bias   (resident)
            ],
            out_specs=pl.BlockSpec((tm, H), lambda i: (i, 0)),
        ),
        compiler_params=pltpu.CompilerParams(
            dimension_semantics=("parallel",)),
    )(u_flat, wu_t, b2d)


# ---------------------------------------------------------------------------
# Phase 2 (sequential): chunked recurrence with VMEM-resident weights/state
# ---------------------------------------------------------------------------
def _cornn_seq_kernel(one_minus_dt_eps, dt_gamma, dt, hidden, t_chunk,
                      y0_ref, z0_ref, pre_u_ref, w_ref,
                      y_out_ref, z_out_ref,
                      yz_sc):
    """One grid step = T_CHUNK coRNN cell steps; [y|z] carried in one scratch."""

    @pl.when(pl.program_id(0) == 0)
    def _():
        yz_sc[:, :hidden] = y0_ref[...].astype(jnp.float32)
        yz_sc[:, hidden:] = z0_ref[...].astype(jnp.float32)

    def step(i, carry):
        y = yz_sc[:, :hidden]
        z = yz_sc[:, hidden:]
        # Fused recurrent matmul: y @ Wy^T + z @ Wz^T  (u-projection was hoisted).
        pre = jnp.dot(yz_sc[...], w_ref[...],
                      preferred_element_type=jnp.float32)
        pre = pre + pre_u_ref[i]                      # precomputed u@Wu^T + b

        y_new = y + dt * z
        z_new = one_minus_dt_eps * z + dt * jnp.tanh(pre) - dt_gamma * y

        # Write the new state straight into the matmul LHS slab (no copies).
        yz_sc[:, :hidden] = y_new
        yz_sc[:, hidden:] = z_new
        y_out_ref[i] = y_new.astype(y_out_ref.dtype)
        z_out_ref[i] = z_new.astype(z_out_ref.dtype)
        return carry

    lax.fori_loop(0, t_chunk, step, 0, unroll=True)


def prepare_cornn_params(w_y2z, w_z2z, w_u2z, b_u2z):
    """Hoisted (call-once) weight prep.

    w_y2z, w_z2z: (H, H) PyTorch Linear layout (out, in), no bias.
    w_u2z:        (H, I) PyTorch Linear layout; b_u2z: (H,).
    Returns (w_rec (2H, H) stacked [Wy^T; Wz^T], wu_t (I, H), b2d (1, H)).
    """
    H, _ = w_u2z.shape
    w_rec = jnp.concatenate([w_y2z.T, w_z2z.T], axis=0).astype(jnp.float32)
    wu_t = w_u2z.T.astype(jnp.float32)
    b2d = b_u2z.reshape(1, H).astype(jnp.float32)
    return w_rec, wu_t, b2d


def cornn_sequence(u_seq, y0, z0, w_rec, wu_t, b2d, *, dt, gamma, epsilon):
    """Run the coRNN recurrence over u_seq (T, B, I).

    Returns (y_seq, z_seq), each (T, B, H): state AFTER consuming u_seq[t].
    """
    T, B, I = u_seq.shape
    H = y0.shape[1]
    if B % 8 != 0:
        raise ValueError(f"batch {B} must be a multiple of 8 (f32 sublane)")
    if H % 128 != 0:
        raise ValueError(f"hidden {H} must be a multiple of 128 (lane width)")

    # ---- Phase 1: one large GEMM for the input projection (hoisted). ----
    pre_u = input_projection(
        u_seq.reshape(T * B, I).astype(jnp.float32), wu_t, b2d
    ).reshape(T, B, H)

    # ---- Phase 2: sequential recurrence, chunked over time. ----
    t_chunk = _pick_tile(T, cands=(16, 8, 4, 2, 1))
    dt_f, gamma_f, eps_f = float(dt), float(gamma), float(epsilon)
    kernel = functools.partial(_cornn_seq_kernel,
                               1.0 - dt_f * eps_f,   # (1 - dt*eps)
                               dt_f * gamma_f,       # dt*gamma
                               dt_f, H, t_chunk)

    # Explicit scoped-VMEM budget: resident weights/state/scratch + double-
    # buffered streamed pre_u & outputs, with headroom; capped at 48 MiB (v7x).
    resident = 2 * H * H * 4 + 2 * B * H * 4 + B * 2 * H * 4
    streamed = 3 * t_chunk * B * H * 4
    vmem_limit = int(min(max(2 * (resident + 2 * streamed) + (4 << 20),
                             16 << 20), 48 << 20))

    y_seq, z_seq = pl.pallas_call(
        kernel,
        out_shape=(
            jax.ShapeDtypeStruct((T, B, H), y0.dtype),
            jax.ShapeDtypeStruct((T, B, H), z0.dtype),
        ),
        grid_spec=pltpu.PrefetchScalarGridSpec(
            num_scalar_prefetch=0,
            grid=(T // t_chunk,),
            in_specs=[
                pl.BlockSpec((B, H), lambda c: (0, 0)),              # y0 (resident)
                pl.BlockSpec((B, H), lambda c: (0, 0)),              # z0 (resident)
                pl.BlockSpec((t_chunk, B, H), lambda c: (c, 0, 0)),  # pre_u chunk
                pl.BlockSpec((2 * H, H), lambda c: (0, 0)),          # W_rec (resident)
            ],
            out_specs=(
                pl.BlockSpec((t_chunk, B, H), lambda c: (c, 0, 0)),
                pl.BlockSpec((t_chunk, B, H), lambda c: (c, 0, 0)),
            ),
            scratch_shapes=[
                pltpu.VMEM((B, 2 * H), jnp.float32),   # [y | z] carry == matmul LHS
            ],
        ),
        compiler_params=pltpu.CompilerParams(
            dimension_semantics=("arbitrary",),        # sequential carry over T
            vmem_limit_bytes=vmem_limit,
        ),
    )(y0, z0, pre_u, w_rec)
    return y_seq, z_seq


def cornn_cell(u, y, z, w_rec, wu_t, b2d, *, dt, gamma, epsilon):
    """Single coRNNCell step (matches the PyTorch module forward)."""
    y_seq, z_seq = cornn_sequence(u[None], y, z, w_rec, wu_t, b2d,
                                  dt=dt, gamma=gamma, epsilon=epsilon)
    return y_seq[0], z_seq[0]


def cornn_cell_ref(u, y, z, w_y2z, w_z2z, w_u2z, b_u2z, *, dt, gamma, epsilon):
    pre = y @ w_y2z.T + z @ w_z2z.T + u @ w_u2z.T + b_u2z
    y_out = y + dt * z
    z_out = z + dt * (jnp.tanh(pre) - gamma * y - epsilon * z)
    return y_out, z_out


if __name__ == "__main__":
    key = jax.random.PRNGKey(0)
    k_u, k_y, k_z, k_wy, k_wz, k_wu, k_b, k_useq = jax.random.split(key, 8)

    batch = 8
    input_size = 64
    hidden_size = 128
    seq_len = 8
    dt, gamma, epsilon = 0.042, 2.7, 4.7

    u = jax.random.normal(k_u, (batch, input_size), jnp.float32)
    y = jax.random.normal(k_y, (batch, hidden_size), jnp.float32)
    z = jax.random.normal(k_z, (batch, hidden_size), jnp.float32)
    u_seq = jax.random.normal(k_useq, (seq_len, batch, input_size), jnp.float32)

    # Deterministic "parameter init" matching nn.Linear shapes (out, in).
    scale = 1.0 / jnp.sqrt(hidden_size)
    w_y2z = jax.random.uniform(k_wy, (hidden_size, hidden_size), jnp.float32,
                               -scale, scale)
    w_z2z = jax.random.uniform(k_wz, (hidden_size, hidden_size), jnp.float32,
                               -scale, scale)
    scale_u = 1.0 / jnp.sqrt(input_size)
    w_u2z = jax.random.uniform(k_wu, (hidden_size, input_size), jnp.float32,
                               -scale_u, scale_u)
    b_u2z = jax.random.uniform(k_b, (hidden_size,), jnp.float32,
                               -scale_u, scale_u)

    # Weight prep happens ONCE (hoisted out of the per-step path).
    w_rec, wu_t, b2d = prepare_cornn_params(w_y2z, w_z2z, w_u2z, b_u2z)

    # --- single cell step (the module's forward) ---
    y_out, z_out = jax.block_until_ready(
        cornn_cell(u, y, z, w_rec, wu_t, b2d,
                   dt=dt, gamma=gamma, epsilon=epsilon))
    y_ref, z_ref = cornn_cell_ref(u, y, z, w_y2z, w_z2z, w_u2z, b_u2z,
                                  dt=dt, gamma=gamma, epsilon=epsilon)
    assert jnp.allclose(y_out, y_ref, atol=1e-4, rtol=1e-4)
    assert jnp.allclose(z_out, z_ref, atol=1e-4, rtol=1e-4)

    # --- full recurrence (weights VMEM-resident, u-projection hoisted) ---
    y_seq, z_seq = jax.block_until_ready(
        cornn_sequence(u_seq, y, z, w_rec, wu_t, b2d,
                       dt=dt, gamma=gamma, epsilon=epsilon))
    yr, zr = y, z
    for t in range(seq_len):
        yr, zr = cornn_cell_ref(u_seq[t], yr, zr, w_y2z, w_z2z, w_u2z, b_u2z,
                                dt=dt, gamma=gamma, epsilon=epsilon)
        assert jnp.allclose(y_seq[t], yr, atol=1e-4, rtol=1e-4)
        assert jnp.allclose(z_seq[t], zr, atol=1e-4, rtol=1e-4)

    print("KERNEL_OK")
</pallas_src>

<mosaic_0001>
module attributes {stable_mosaic.version = 11 : i64} {
  func.func @_input_proj_kernel(%arg0: i32, %arg1: memref<8x64xf32, #tpu.memory_space<vmem>>, %arg2: memref<64x128xf32, #tpu.memory_space<vmem>>, %arg3: memref<1x128xf32, #tpu.memory_space<vmem>>, %arg4: memref<8x128xf32, #tpu.memory_space<vmem>>) attributes {dimension_semantics = [#tpu.dimension_semantics<parallel>], iteration_bounds = array<i64: 1>, scalar_prefetch = 0 : i64, scratch_operands = 0 : i64, tpu.core_type = #tpu.core_type<tc>, window_params = [{transform_indices = @transform_0, window_bounds = array<i64: 8, 64>}, {pipeline_mode = #tpu.pipeline_mode<synchronous>, transform_indices = @transform_1, window_bounds = array<i64: 64, 128>}, {pipeline_mode = #tpu.pipeline_mode<synchronous>, transform_indices = @transform_2, window_bounds = array<i64: 1, 128>}, {transform_indices = @transform_3, window_bounds = array<i64: 8, 128>}]} {
    %c0 = arith.constant 0 : index
    %c0_0 = arith.constant 0 : index
    %0 = vector.load %arg1[%c0, %c0_0] : memref<8x64xf32, #tpu.memory_space<vmem>>, vector<8x64xf32>
    %c0_1 = arith.constant 0 : index
    %c0_2 = arith.constant 0 : index
    %1 = vector.load %arg2[%c0_1, %c0_2] : memref<64x128xf32, #tpu.memory_space<vmem>>, vector<64x128xf32>
    %cst = arith.constant dense<0.000000e+00> : vector<8x128xf32>
    %2 = tpu.matmul %0, %1, %cst {dimension_numbers = #tpu.dot_dimension_numbers<[1], [0], [0], [1], [0, 0, 1, 1], [], []>} : vector<8x64xf32>, vector<64x128xf32>, vector<8x128xf32> -> vector<8x128xf32>
    %c0_3 = arith.constant 0 : index
    %c0_4 = arith.constant 0 : index
    %3 = vector.load %arg3[%c0_3, %c0_4] : memref<1x128xf32, #tpu.memory_space<vmem>>, vector<1x128xf32>
    %4 = vector.broadcast %3 : vector<1x128xf32> to vector<8x128xf32>
    %5 = arith.addf %2, %4 : vector<8x128xf32>
    %c0_5 = arith.constant 0 : index
    %c0_6 = arith.constant 0 : index
    %6 = vector.load %arg4[%c0_5, %c0_6] : memref<8x128xf32, #tpu.memory_space<vmem>>, vector<8x128xf32>
    tpu.vector_store %arg4[%c0_5, %c0_6], %5 {strides = array<i32>} : memref<8x128xf32, #tpu.memory_space<vmem>>, vector<8x128xf32>,
    return
  }
  func.func @transform_0(%arg0: i32) -> (i32, i32) {
    %c0_i32 = arith.constant 0 : i32
    %c0_i32_0 = arith.constant 0 : i32
    return %arg0, %c0_i32 : i32, i32
  }
  func.func @transform_1(%arg0: i32) -> (i32, i32) {
    %c0_i32 = arith.constant 0 : i32
    %c0_i32_0 = arith.constant 0 : i32
    %c0_i32_1 = arith.constant 0 : i32
    return %c0_i32, %c0_i32_0 : i32, i32
  }
  func.func @transform_2(%arg0: i32) -> (i32, i32) {
    %c0_i32 = arith.constant 0 : i32
    %c0_i32_0 = arith.constant 0 : i32
    %c0_i32_1 = arith.constant 0 : i32
    return %c0_i32, %c0_i32_0 : i32, i32
  }
  func.func @transform_3(%arg0: i32) -> (i32, i32) {
    %c0_i32 = arith.constant 0 : i32
    %c0_i32_0 = arith.constant 0 : i32
    return %arg0, %c0_i32 : i32, i32
  }
}

</mosaic_0001>

<llo_original>
// kernel: tpu_custom_call.1
$region0: #{tpu_custom_call.1}
  #allocation0 [shape = 'u32[]', space=smem, size = 0x4, offset = 0x4, fixed_abs, tag = 'smem constant byte address 0x4 - core index']
  #allocation1 [shape = 'u32[144,128]{1,0:T(1,128)}', space=vmem, size = 0x12000, scoped, tag = 'internal scratch']
  %s0 = inlined_call_operand.hbm [shape: f32[8,64], index: 0, kind: input, shape index: {}]
  %s1 = inlined_call_operand.hbm [shape: f32[64,128], index: 1, kind: input, shape index: {}]
  %s2 = inlined_call_operand.vmem [shape: f32[1,128], index: 2, kind: input, shape index: {}]
  %s3 = inlined_call_operand.hbm [shape: f32[8,128], index: 3, kind: output, shape index: {}]
  %s4 = sld [smem:[#allocation0]]
  $region30: #{tpu_custom_call.1} parent=0
    _
  %s6 = ssub.s32 1, %s4
  %s7 = scalar_select 0, %s6, %s4
  $region1: #{tpu_custom_call.1} parent=0
    #allocation2 [shape = 'u8[4096]{0}', space=vmem, size = 0x1000, scoped, tag = 'input window, operand 0, single buffered']
    #allocation3 [shape = 's32[1]{0}', space=sflag, size = 0x4, scoped, tag = 'scoped memory for tpu_custom_call.1']
    #allocation4 [shape = 's32[1]{0}', space=sflag, size = 0x4, scoped, tag = 'scoped memory for tpu_custom_call.1']
    #allocation5 [shape = 'u8[32768]{0}', space=vmem, size = 0x8000, scoped, tag = 'input window, operand 1, single buffered']
    #allocation6 [shape = 's32[1]{0}', space=sflag, size = 0x4, scoped, tag = 'scoped memory for tpu_custom_call.1']
    #allocation7 [shape = 'u8[4096]{0}', space=vmem, size = 0x1000, scoped, tag = 'output window, operand 0, single buffered']
    %8 = vsyncpa [#allocation3], 0
    %9 = vsyncpa [#allocation6], 0
    %10 = vsyncpa [#allocation4], 0
    // Predicated region
    $region2: #{tpu_custom_call.1} parent=1 // pred_check
      _
    $region3: #{tpu_custom_call.1} parent=1 // pred_check_branch
      %12 = sbr.rel (0) target = $region5
    $region4: #{tpu_custom_call.1} parent=1 // pred_region
      %s14 = ssub.s32 128, 128
      %15 = vsyncadd [#allocation3], %s14
      %s17 = sshll.u32 [#allocation2], 4
      %s18 = int_to_ptr.vmem [resolvable:$true] %s17
      %20 = dma.hbm_to_vmem [thread:$0]  %s0, 128, %s18, [#allocation3]
    $region5: #{tpu_custom_call.1} parent=1 // pred_fallthru
      _
    // Predicated region
    $region6: #{tpu_custom_call.1} parent=1 // pred_check
      _
    $region7: #{tpu_custom_call.1} parent=1 // pred_check_branch
      %22 = sbr.rel (0) target = $region9
    $region8: #{tpu_custom_call.1} parent=1 // pred_region
      %s24 = ssub.s32 1024, 1024
      %25 = vsyncadd [#allocation6], %s24
      %s26 = sshll.u32 [#allocation5], 4
      %s27 = int_to_ptr.vmem [resolvable:$true] %s26
      %32 = dma.hbm_to_vmem [thread:$0]  %s1, 1024, %s27, [#allocation6], 128, 128, 8
    $region9: #{tpu_custom_call.1} parent=1 // pred_fallthru
      _
    // Predicated region
    $region10: #{tpu_custom_call.1} parent=1 // pred_check
      _
    $region11: #{tpu_custom_call.1} parent=1 // pred_check_branch
      %34 = sbr.rel (0) target = $region13
    $region12: #{tpu_custom_call.1} parent=1 // pred_region
      _
    $region13: #{tpu_custom_call.1} parent=1 // pred_fallthru
      _
    // Predicated region
    $region14: #{tpu_custom_call.1} parent=1 // pred_check
      _
    $region15: #{tpu_custom_call.1} parent=1 // pred_check_branch
      %36 = sbr.rel (0) target = $region17
    $region16: #{tpu_custom_call.1} parent=1 // pred_region
      %37 = dma.done [#allocation3], 128
    $region17: #{tpu_custom_call.1} parent=1 // pred_fallthru
      _
    // Predicated region
    $region18: #{tpu_custom_call.1} parent=1 // pred_check
      _
    $region19: #{tpu_custom_call.1} parent=1 // pred_check_branch
      %39 = sbr.rel (0) target = $region21
    $region20: #{tpu_custom_call.1} parent=1 // pred_region
      %40 = dma.done [#allocation6], 1024
    $region21: #{tpu_custom_call.1} parent=1 // pred_fallthru
      _
    %v41 = vld [vmem:[#allocation2] sm:$0xff]
    %v42 = vld [vmem:[#allocation5] sm:$0xff]
    %v43 = vld [vmem:[#allocation5 + $0x8] sm:$0xff]
    %v44 = vld [vmem:[#allocation5 + $0x10] sm:$0xff]
    %v45 = vld [vmem:[#allocation5 + $0x18] sm:$0xff]
    %v46 = vld [vmem:[#allocation5 + $0x20] sm:$0xff]
    %v47 = vld [vmem:[#allocation5 + $0x28] sm:$0xff]
    %v48 = vld [vmem:[#allocation5 + $0x30] sm:$0xff]
    %v49 = vld [vmem:[#allocation5 + $0x38] sm:$0xff]
    %v50 = vld [vmem:[%s2] sm:$0x1]
    %v52 = vlaneseq
    %v53 = vshrl.u32 %v52, 7
    %v54 = vsub.s32 0, %v53
    %v55 = vrot.slane %v50, %v54
    %vm57 = vcmask 523264
    %v59 = vsel %vm57, %v41, 0
    %61 = vmatprep.subr.mxu0 0.0
    %62 = vmatpush1.msra.mxu0 %v42
    %63 = vmatprep.subr.mxu0 0.0
    %64 = vmatpush1.msra.mxu0 %v43
    %65 = vmatprep.subr.mxu0 0.0
    %66 = vmatpush1.msra.mxu0 %v44
    %67 = vmatprep.subr.mxu0 0.0
    %68 = vmatpush1.msra.mxu0 %v45
    %69 = vmatprep.subr.mxu0 0.0
    %70 = vmatpush1.msra.mxu0 %v46
    %71 = vmatprep.subr.mxu0 0.0
    %72 = vmatpush1.msra.mxu0 %v47
    %73 = vmatprep.subr.mxu0 0.0
    %74 = vmatpush1.msra.mxu0 %v48
    %75 = vmatprep.subr.mxu0 0.0
    %76 = vmatpush1.msra.mxu0 %v49
    %77 = vmatprep.subr.mxu0 0.0
    %78 = vmatpush1.msra.mxu0 0.0
    %79 = vmatprep.subr.mxu0 0.0
    %80 = vmatpush1.msra.mxu0 0.0
    %81 = vmatprep.subr.mxu0 0.0
    %82 = vmatpush1.msra.mxu0 0.0
    %83 = vmatprep.subr.mxu0 0.0
    %84 = vmatpush1.msra.mxu0 0.0
    %85 = vmatprep.subr.mxu0 0.0
    %86 = vmatpush1.msra.mxu0 0.0
    %87 = vmatprep.subr.mxu0 0.0
    %88 = vmatpush1.msra.mxu0 0.0
    %89 = vmatprep.subr.mxu0 0.0
    %90 = vmatpush1.msra.mxu0 0.0
    %91 = vmatprep.subr.mxu0 0.0
    %92 = vmatpush1.msra.mxu0 0.0
    %93 = vmatprep.subr.mxu0 0.0
    %94 = vmatpush1.msra.mxu0 0.0
    %95 = vmatprep.subr.mxu0 0.0
    %96 = vmatpush1.msra.mxu0 0.0
    %97 = vmatprep.subr.mxu0 0.0
    %98 = vmatpush1.msra.mxu0 0.0
    %99 = vmatprep.subr.mxu0 0.0
    %100 = vmatpush1.msra.mxu0 0.0
    %101 = vmatprep.subr.mxu0 0.0
    %102 = vmatpush1.msra.mxu0 0.0
    %103 = vmatprep.subr.mxu0 0.0
    %104 = vmatpush1.msra.mxu0 0.0
    %105 = vmatprep.subr.mxu0 0.0
    %106 = vmatpush1.msra.mxu0 0.0
    %107 = vmatprep.subr.mxu0 0.0
    %108 = vmatpush1.msra.mxu0 0.0
    %109 = vmatprep.subr.mxu0 0.0
    %110 = vmatpush1.msra.mxu0 0.0
    %111 = vmatprep.subr.mxu0 0.0
    %112 = vmatpush1.msra.mxu0 0.0
    %113 = vmatprep.subr.mxu0 0.0
    %114 = vmatpush1.msra.mxu0 0.0
    %115 = vmatprep.subr.mxu0 0.0
    %116 = vmatpush1.msra.mxu0 0.0
    %117 = vmatprep.subr.mxu0 0.0
    %118 = vmatpush1.msra.mxu0 0.0
    %119 = vmatprep.subr.mxu0 0.0
    %120 = vmatpush1.msra.mxu0 0.0
    %121 = vmatprep.subr.mxu0 0.0
    %122 = vmatpush1.msra.mxu0 0.0
    %123 = vmatprep.subr.mxu0 0.0
    %124 = vmatpush1.msra.mxu0 0.0
    %125 = vmatprep.mubr.f32.mxu0 0.0
    %126 = vmatmul.mubr.f32.gmra.mrb[0].mxu0 %v59
    %v127 = vpop.f32.mrb[0].mxu0
    %v128 = vadd.f32 %v55, %v127
    %v129 = vpop.f32.mrb[0].mxu0
    %130 = vdwg.mxu0
    %131 = vst [vmem:[#allocation7] sm:$0xff] %v128
    // Predicated region
    $region22: #{tpu_custom_call.1} parent=1 // pred_check
      _
    $region23: #{tpu_custom_call.1} parent=1 // pred_check_branch
      %133 = sbr.rel (0) target = $region25
    $region24: #{tpu_custom_call.1} parent=1 // pred_region
      %s135 = ssub.s32 128, 128
      %136 = vsyncadd [#allocation4], %s135
      %s138 = sshll.u32 [#allocation7], 4
      %s139 = int_to_ptr.vmem [resolvable:$true] %s138
      %141 = dma.vmem_to_hbm [thread:$0]  %s139, 128, %s3, [#allocation4]
    $region25: #{tpu_custom_call.1} parent=1 // pred_fallthru
      _
    // Predicated region
    $region26: #{tpu_custom_call.1} parent=1 // pred_check
      _
    $region27: #{tpu_custom_call.1} parent=1 // pred_check_branch
      %143 = sbr.rel (0) target = $region29
    $region28: #{tpu_custom_call.1} parent=1 // pred_region
      %144 = dma.done [#allocation4], 128
    $region29: #{tpu_custom_call.1} parent=1 // pred_fallthru
      _
    %145 = vsyncpa [#allocation3], 1
    %146 = vsyncpa [#allocation6], 1
    %147 = vsyncpa [#allocation4], 1

</llo_original>
